<compile_context>
chip_gen: v6e
topology: v6e:2x2x1
jax: 0.10.0
libtpu: 0.0.40
codegen_flags: <defaults>
</compile_context>

<pallas_src>
import functools

import jax
import jax.numpy as jnp
import numpy as np
from jax import lax
from jax.experimental import pallas as pl
from jax.experimental.pallas import tpu as pltpu


# ------------------------------------------------------------------ kernels --

def _apply_conditional_affine(cond_ref, ww_ref, bw_ref, wb_ref, bb_ref,
                              x_ref, o_ref, mean, inv_std, n_batch):
    """Shared apply: per-sample gamma/beta (the two Linear layers) + BN affine."""
    ww = ww_ref[...].astype(jnp.float32)                      # (tc, D)
    wb = wb_ref[...].astype(jnp.float32)                      # (tc, D)
    bw = bw_ref[...].astype(jnp.float32)                      # (tc, 1)
    bb = bb_ref[...].astype(jnp.float32)                      # (tc, 1)

    def per_batch(n):
        # Exact-f32 VPU reduction over D (channels on sublanes -> lane reduce).
        cn = cond_ref[pl.ds(n, 1), :].astype(jnp.float32)     # (1, D)
        gamma = jnp.sum(ww * cn, axis=1, keepdims=True) + bw  # (tc, 1)
        beta = jnp.sum(wb * cn, axis=1, keepdims=True) + bb   # (tc, 1)
        # out = (1+gamma)*(x-mean)*inv_std + beta == x*scale + shift
        scale = (1.0 + gamma) * inv_std                       # (tc, 1)
        shift = beta - scale * mean                           # (tc, 1)
        o_ref[n] = (x_ref[n].astype(jnp.float32) * scale + shift).astype(o_ref.dtype)

    if n_batch <= 8:
        for n in range(n_batch):        # small N: fully unrolled, static indices
            per_batch(n)
    else:                               # large N: bound code size / live ranges
        pl.loop(0, n_batch)(per_batch)


def _cond_bn_resident_kernel(cond_ref, ww_ref, bw_ref, wb_ref, bb_ref, x_ref, o_ref,
                             *, eps, inv_count, n_batch):
    """Single-pass path: the whole (N, tc, H*W) slab is VMEM-resident."""
    tc = x_ref.shape[1]
    zero = jnp.zeros((tc, 1), jnp.float32)

    def stats_body(n, carry):
        s, ss = carry
        xn = x_ref[n].astype(jnp.float32)                     # (tc, HW) in f32
        return (s + jnp.sum(xn, axis=1, keepdims=True),
                ss + jnp.sum(xn * xn, axis=1, keepdims=True))

    s, ss = lax.fori_loop(0, n_batch, stats_body, (zero, zero))
    mean = s * inv_count                                      # (tc, 1)
    var = ss * inv_count - mean * mean                        # biased var (PyTorch BN)
    inv_std = lax.rsqrt(var + eps)                            # EUP rsqrt
    _apply_conditional_affine(cond_ref, ww_ref, bw_ref, wb_ref, bb_ref,
                              x_ref, o_ref, mean, inv_std, n_batch)


def _bn_stats_kernel(x_ref, mean_ref, inv_std_ref, s_ref, ss_ref,
                     *, eps, inv_count, n_batch):
    """Two-pass path, pass 1: accumulate per-channel sum / sumsq over H*W tiles."""
    h = pl.program_id(1)

    @pl.when(h == 0)
    def _():
        s_ref[...] = jnp.zeros_like(s_ref)
        ss_ref[...] = jnp.zeros_like(ss_ref)

    def stats_body(n, carry):
        s, ss = carry
        xn = x_ref[n].astype(jnp.float32)
        return (s + jnp.sum(xn, axis=1, keepdims=True),
                ss + jnp.sum(xn * xn, axis=1, keepdims=True))

    s, ss = lax.fori_loop(0, n_batch, stats_body, (s_ref[...], ss_ref[...]))
    s_ref[...] = s
    ss_ref[...] = ss

    @pl.when(h == pl.num_programs(1) - 1)
    def _():
        mean = s * inv_count
        var = ss * inv_count - mean * mean
        mean_ref[...] = mean
        inv_std_ref[...] = lax.rsqrt(var + eps)


def _cond_bn_apply_kernel(cond_ref, ww_ref, bw_ref, wb_ref, bb_ref,
                          mean_ref, inv_std_ref, x_ref, o_ref, *, n_batch):
    """Two-pass path, pass 2: apply using precomputed per-channel stats."""
    _apply_conditional_affine(cond_ref, ww_ref, bw_ref, wb_ref, bb_ref,
                              x_ref, o_ref, mean_ref[...], inv_std_ref[...], n_batch)


# ------------------------------------------------------------- tile sizing --

def _vmem_limit_bytes():
    cap = 64 << 20  # conservative fallback: v7x per-TensorCore VMEM
    try:
        info = pltpu.get_tpu_info()
        cap = int(getattr(info, "vmem_capacity_bytes", cap)) or cap
    except Exception:
        pass
    # 96 MiB on 128-MiB chips (v5e/v6e), 48 MiB on v7x.
    return int(min((cap * 3) // 4, 100 << 20))


def _divisor_tiles(total, quantum):
    """Divisors of `total` that are multiples of `quantum`, plus `total` itself."""
    cands = {d for d in range(quantum, total + 1, quantum) if total % d == 0}
    cands.add(total)
    return sorted(cands)


def _channel_tile_candidates(C, itemsize):
    quantum = 8 * max(1, 4 // max(1, itemsize))   # 8 f32, 16 bf16, 32 int8/fp8
    cands = _divisor_tiles(C, quantum)
    # Prefer >= 2 grid steps so the "parallel" channel axis can use both v7x TCs.
    multi = [d for d in cands if C // d >= 2]
    return multi if multi else cands


# ----------------------------------------------------------------- wrapper --

def cond_batch_norm_2d(hidden_nchw, conditional, params, *, eps=1e-4, two_pass=None):
    """Fused CondBatchNorm2d forward. hidden: (N, C, H, W); conditional: (N, D)."""
    N, C, H, W = hidden_nchw.shape
    Nc, D = conditional.shape
    assert Nc == N
    HW = H * W
    ww, bw, wb, bb = params["ww"], params["wb_w"], params["wb"], params["wb_b"]
    bw2 = bw.reshape(C, 1)
    bb2 = bb.reshape(C, 1)

    # Contiguous reshape only (no transpose / HBM copy): lanes = H*W.
    x3d = hidden_nchw.reshape(N, C, HW)

    isz = jnp.dtype(hidden_nchw.dtype).itemsize
    vmem_limit = _vmem_limit_bytes()
    hard_cap = int(vmem_limit * 0.8) // 4        # per x tile: 2x(in+out) double-buffered
    soft_cap = min(vmem_limit // 6, hard_cap)    # perf target; overshoot only if needed

    c_cands = _channel_tile_candidates(C, isz)
    tile_bytes = lambda tc, hw: N * tc * hw * isz

    res_hard = [d for d in c_cands if tile_bytes(d, HW) <= hard_cap]
    if two_pass is None:
        two_pass = len(res_hard) == 0            # resident slab cannot fit VMEM

    common = dict(eps=float(eps), inv_count=1.0 / float(N * HW), n_batch=N)
    out_dtype = hidden_nchw.dtype

    if not two_pass:
        res_soft = [d for d in res_hard if tile_bytes(d, HW) <= soft_cap]
        tc = max(res_soft) if res_soft else (min(res_hard) if res_hard else min(c_cands))
        grid = (C // tc,)
        out3d = pl.pallas_call(
            functools.partial(_cond_bn_resident_kernel, **common),
            out_shape=jax.ShapeDtypeStruct((N, C, HW), out_dtype),
            grid_spec=pltpu.PrefetchScalarGridSpec(
                num_scalar_prefetch=0,
                grid=grid,
                in_specs=[
                    pl.BlockSpec((N, D), lambda c: (0, 0)),          # conditional
                    pl.BlockSpec((tc, D), lambda c: (c, 0)),         # weight.weight
                    pl.BlockSpec((tc, 1), lambda c: (c, 0)),         # weight.bias
                    pl.BlockSpec((tc, D), lambda c: (c, 0)),         # bias.weight
                    pl.BlockSpec((tc, 1), lambda c: (c, 0)),         # bias.bias
                    pl.BlockSpec((N, tc, HW), lambda c: (0, c, 0)),  # hidden
                ],
                out_specs=pl.BlockSpec((N, tc, HW), lambda c: (0, c, 0)),
            ),
            compiler_params=pltpu.CompilerParams(
                dimension_semantics=("parallel",),
                vmem_limit_bytes=vmem_limit),
        )(conditional, ww, bw2, wb, bb2, x3d)
        return out3d.reshape(N, C, H, W)

    # --- two-pass fallback: tile H*W, accumulate stats, then apply (1.5x HBM) ---
    hw_cands = _divisor_tiles(HW, 128)
    tc_fit = [d for d in c_cands if tile_bytes(d, min(hw_cands)) <= soft_cap]
    tc = max(tc_fit) if tc_fit else min(c_cands)
    hw_fit = [d for d in hw_cands if tile_bytes(tc, d) <= soft_cap]
    thw = max(hw_fit) if hw_fit else min(hw_cands)
    grid = (C // tc, HW // thw)

    mean, inv_std = pl.pallas_call(
        functools.partial(_bn_stats_kernel, **common),
        out_shape=(jax.ShapeDtypeStruct((C, 1), jnp.float32),
                   jax.ShapeDtypeStruct((C, 1), jnp.float32)),
        grid_spec=pltpu.PrefetchScalarGridSpec(
            num_scalar_prefetch=0,
            grid=grid,
            in_specs=[pl.BlockSpec((N, tc, thw), lambda c, h: (0, c, h))],
            out_specs=[pl.BlockSpec((tc, 1), lambda c, h: (c, 0)),
                       pl.BlockSpec((tc, 1), lambda c, h: (c, 0))],
            scratch_shapes=[pltpu.VMEM((tc, 1), jnp.float32),
                            pltpu.VMEM((tc, 1), jnp.float32)],
        ),
        compiler_params=pltpu.CompilerParams(
            dimension_semantics=("parallel", "arbitrary"),
            vmem_limit_bytes=vmem_limit),
    )(x3d)

    out3d = pl.pallas_call(
        functools.partial(_cond_bn_apply_kernel, n_batch=N),
        out_shape=jax.ShapeDtypeStruct((N, C, HW), out_dtype),
        grid_spec=pltpu.PrefetchScalarGridSpec(
            num_scalar_prefetch=0,
            grid=grid,
            in_specs=[
                pl.BlockSpec((N, D), lambda c, h: (0, 0)),
                pl.BlockSpec((tc, D), lambda c, h: (c, 0)),
                pl.BlockSpec((tc, 1), lambda c, h: (c, 0)),
                pl.BlockSpec((tc, D), lambda c, h: (c, 0)),
                pl.BlockSpec((tc, 1), lambda c, h: (c, 0)),
                pl.BlockSpec((tc, 1), lambda c, h: (c, 0)),       # mean
                pl.BlockSpec((tc, 1), lambda c, h: (c, 0)),       # inv_std
                pl.BlockSpec((N, tc, thw), lambda c, h: (0, c, h)),
            ],
            out_specs=pl.BlockSpec((N, tc, thw), lambda c, h: (0, c, h)),
        ),
        compiler_params=pltpu.CompilerParams(
            dimension_semantics=("parallel", "parallel"),
            vmem_limit_bytes=vmem_limit),
    )(conditional, ww, bw2, wb, bb2, mean, inv_std, x3d)
    return out3d.reshape(N, C, H, W)


# ----------------------------------------------------------------- helpers --

def init_params(key, conditional_dim, hidden_dim, scale=0.1):
    """Synthetic parameters, nn.Linear layout: weight (out, in), bias (out,)."""
    k1, k2, k3, k4 = jax.random.split(key, 4)
    return {
        "ww":   scale * jax.random.normal(k1, (hidden_dim, conditional_dim), jnp.float32),
        "wb_w": scale * jax.random.normal(k2, (hidden_dim,), jnp.float32),
        "wb":   scale * jax.random.normal(k3, (hidden_dim, conditional_dim), jnp.float32),
        "wb_b": scale * jax.random.normal(k4, (hidden_dim,), jnp.float32),
    }


def reference(hidden, conditional, params, eps=1e-4):
    """Pure-JAX reference (training-mode BatchNorm2d, biased variance)."""
    prec = lax.Precision.HIGHEST
    gamma = jnp.einsum("nd,cd->nc", conditional, params["ww"], precision=prec) + params["wb_w"]
    beta = jnp.einsum("nd,cd->nc", conditional, params["wb"], precision=prec) + params["wb_b"]
    mean = hidden.mean(axis=(0, 2, 3))
    var = hidden.var(axis=(0, 2, 3))                     # ddof=0 (biased), as PyTorch BN
    xhat = (hidden - mean[None, :, None, None]) * lax.rsqrt(var + eps)[None, :, None, None]
    return (1.0 + gamma)[:, :, None, None] * xhat + beta[:, :, None, None]


# -------------------------------------------------------------------- main --

if __name__ == "__main__":
    N, C, D, H, W = 2, 32, 16, 16, 16      # batch=2, hidden_dim=32, cond_dim=16, 16x16
    key = jax.random.PRNGKey(0)
    kh, kc, kp = jax.random.split(key, 3)
    hidden = jax.random.normal(kh, (N, C, H, W), jnp.float32)
    conditional = jax.random.normal(kc, (N, D), jnp.float32)
    params = init_params(kp, D, C)

    ref = reference(hidden, conditional, params, eps=1e-4)

    # Fused single-pass (VMEM-resident stats) path — the normal path.
    out = jax.block_until_ready(cond_batch_norm_2d(hidden, conditional, params, eps=1e-4))
    assert out.shape == (N, C, H, W), out.shape
    np.testing.assert_allclose(np.asarray(out), np.asarray(ref), rtol=1e-3, atol=1e-3)

    # Two-pass fallback path (exercised explicitly here; auto-selected only when
    # the resident (N, tc, H*W) block cannot fit VMEM, e.g. big maps on v7x).
    out2 = jax.block_until_ready(
        cond_batch_norm_2d(hidden, conditional, params, eps=1e-4, two_pass=True))
    np.testing.assert_allclose(np.asarray(out2), np.asarray(ref), rtol=1e-3, atol=1e-3)

    print("KERNEL_OK")
</pallas_src>

<mosaic_0001>
module attributes {stable_mosaic.version = 11 : i64} {
  func.func @_cond_bn_resident_kernel(%arg0: i32, %arg1: memref<2x16xf32, #tpu.memory_space<vmem>>, %arg2: memref<16x16xf32, #tpu.memory_space<vmem>>, %arg3: memref<16x1xf32, #tpu.memory_space<vmem>>, %arg4: memref<16x16xf32, #tpu.memory_space<vmem>>, %arg5: memref<16x1xf32, #tpu.memory_space<vmem>>, %arg6: memref<2x16x256xf32, #tpu.memory_space<vmem>>, %arg7: memref<2x16x256xf32, #tpu.memory_space<vmem>>) attributes {dimension_semantics = [#tpu.dimension_semantics<parallel>], iteration_bounds = array<i64: 2>, scalar_prefetch = 0 : i64, scratch_operands = 0 : i64, tpu.core_type = #tpu.core_type<tc>, window_params = [{pipeline_mode = #tpu.pipeline_mode<synchronous>, transform_indices = @transform_0, window_bounds = array<i64: 2, 16>}, {transform_indices = @transform_1, window_bounds = array<i64: 16, 16>}, {transform_indices = @transform_2, window_bounds = array<i64: 16, 1>}, {transform_indices = @transform_3, window_bounds = array<i64: 16, 16>}, {transform_indices = @transform_4, window_bounds = array<i64: 16, 1>}, {transform_indices = @transform_5, window_bounds = array<i64: 2, 16, 256>}, {transform_indices = @transform_6, window_bounds = array<i64: 2, 16, 256>}]} {
    %cst = arith.constant 0.000000e+00 : f32
    %0 = vector.broadcast %cst : f32 to vector<16x1xf32>
    %c0_i32 = arith.constant 0 : i32
    %c2_i32 = arith.constant 2 : i32
    %1 = arith.addi %c0_i32, %c2_i32 : i32
    %c1_i32 = arith.constant 1 : i32
    %2:2 = scf.for %arg8 = %c0_i32 to %1 step %c1_i32 iter_args(%arg9 = %0, %arg10 = %0) -> (vector<16x1xf32>, vector<16x1xf32>)  : i32 {
      %66 = arith.index_cast %arg8 : i32 to index
      %c0_32 = arith.constant 0 : index
      %c0_33 = arith.constant 0 : index
      %67 = vector.load %arg6[%66, %c0_32, %c0_33] : memref<2x16x256xf32, #tpu.memory_space<vmem>>, vector<1x16x256xf32>
      %68 = vector.shape_cast %67 : vector<1x16x256xf32> to vector<16x256xf32>
      %cst_34 = arith.constant dense<0.000000e+00> : vector<16xf32>
      %69 = vector.multi_reduction <add>, %68, %cst_34 [1] : vector<16x256xf32> to vector<16xf32>
      %70 = vector.shape_cast %69 : vector<16xf32> to vector<16x1xf32>
      %71 = arith.addf %arg9, %70 : vector<16x1xf32>
      %72 = arith.mulf %68, %68 : vector<16x256xf32>
      %cst_35 = arith.constant dense<0.000000e+00> : vector<16xf32>
      %73 = vector.multi_reduction <add>, %72, %cst_35 [1] : vector<16x256xf32> to vector<16xf32>
      %74 = vector.shape_cast %73 : vector<16xf32> to vector<16x1xf32>
      %75 = arith.addf %arg10, %74 : vector<16x1xf32>
      scf.yield %71, %75 : vector<16x1xf32>, vector<16x1xf32>
    }
    %c2_i32_0 = arith.constant 2 : i32
    %cst_1 = arith.constant 0.001953125 : f32
    %3 = vector.broadcast %cst_1 : f32 to vector<16x1xf32>
    %4 = arith.mulf %2#0, %3 : vector<16x1xf32>
    %cst_2 = arith.constant 0.001953125 : f32
    %5 = vector.broadcast %cst_2 : f32 to vector<16x1xf32>
    %6 = arith.mulf %2#1, %5 : vector<16x1xf32>
    %7 = arith.mulf %4, %4 : vector<16x1xf32>
    %8 = arith.subf %6, %7 : vector<16x1xf32>
    %cst_3 = arith.constant 9.99999974E-5 : f32
    %9 = vector.broadcast %cst_3 : f32 to vector<16x1xf32>
    %10 = arith.addf %8, %9 : vector<16x1xf32>
    %11 = math.rsqrt %10 : vector<16x1xf32>
    %c0 = arith.constant 0 : index
    %c0_4 = arith.constant 0 : index
    %12 = vector.load %arg2[%c0, %c0_4] : memref<16x16xf32, #tpu.memory_space<vmem>>, vector<16x16xf32>
    %c0_5 = arith.constant 0 : index
    %c0_6 = arith.constant 0 : index
    %13 = vector.load %arg4[%c0_5, %c0_6] : memref<16x16xf32, #tpu.memory_space<vmem>>, vector<16x16xf32>
    %c0_7 = arith.constant 0 : index
    %c0_8 = arith.constant 0 : index
    %14 = vector.load %arg3[%c0_7, %c0_8] : memref<16x1xf32, #tpu.memory_space<vmem>>, vector<16x1xf32>
    %c0_9 = arith.constant 0 : index
    %c0_10 = arith.constant 0 : index
    %15 = vector.load %arg5[%c0_9, %c0_10] : memref<16x1xf32, #tpu.memory_space<vmem>>, vector<16x1xf32>
    %c0_11 = arith.constant 0 : index
    %c0_12 = arith.constant 0 : index
    %16 = vector.load %arg1[%c0_11, %c0_12] : memref<2x16xf32, #tpu.memory_space<vmem>>, vector<1x16xf32>
    %17 = vector.broadcast %16 : vector<1x16xf32> to vector<16x16xf32>
    %18 = arith.mulf %12, %17 : vector<16x16xf32>
    %cst_13 = arith.constant dense<0.000000e+00> : vector<16xf32>
    %19 = vector.multi_reduction <add>, %18, %cst_13 [1] : vector<16x16xf32> to vector<16xf32>
    %20 = vector.shape_cast %19 : vector<16xf32> to vector<16x1xf32>
    %21 = arith.addf %20, %14 : vector<16x1xf32>
    %22 = vector.broadcast %16 : vector<1x16xf32> to vector<16x16xf32>
    %23 = arith.mulf %13, %22 : vector<16x16xf32>
    %cst_14 = arith.constant dense<0.000000e+00> : vector<16xf32>
    %24 = vector.multi_reduction <add>, %23, %cst_14 [1] : vector<16x16xf32> to vector<16xf32>
    %25 = vector.shape_cast %24 : vector<16xf32> to vector<16x1xf32>
    %26 = arith.addf %25, %15 : vector<16x1xf32>
    %cst_15 = arith.constant 1.000000e+00 : f32
    %27 = vector.broadcast %cst_15 : f32 to vector<16x1xf32>
    %28 = arith.addf %27, %21 : vector<16x1xf32>
    %29 = arith.mulf %28, %11 : vector<16x1xf32>
    %30 = arith.mulf %29, %4 : vector<16x1xf32>
    %31 = arith.subf %26, %30 : vector<16x1xf32>
    %c0_16 = arith.constant 0 : index
    %c0_17 = arith.constant 0 : index
    %c0_18 = arith.constant 0 : index
    %32 = vector.load %arg6[%c0_16, %c0_17, %c0_18] : memref<2x16x256xf32, #tpu.memory_space<vmem>>, vector<1x16x256xf32>
    %33 = vector.shape_cast %32 : vector<1x16x256xf32> to vector<16x256xf32>
    %34 = vector.broadcast %29 : vector<16x1xf32> to vector<16x256xf32>
    %35 = arith.mulf %33, %34 : vector<16x256xf32>
    %36 = vector.broadcast %31 : vector<16x1xf32> to vector<16x256xf32>
    %37 = arith.addf %35, %36 : vector<16x256xf32>
    %c0_19 = arith.constant 0 : index
    %c0_20 = arith.constant 0 : index
    %c0_21 = arith.constant 0 : index
    %38 = vector.load %arg7[%c0_19, %c0_20, %c0_21] : memref<2x16x256xf32, #tpu.memory_space<vmem>>, vector<1x16x256xf32>
    %39 = vector.shape_cast %38 : vector<1x16x256xf32> to vector<16x256xf32>
    %40 = vector.shape_cast %37 : vector<16x256xf32> to vector<1x16x256xf32>
    tpu.vector_store %arg7[%c0_19, %c0_20, %c0_21], %40 {strides = array<i32>} : memref<2x16x256xf32, #tpu.memory_space<vmem>>, vector<1x16x256xf32>,
    %c1 = arith.constant 1 : index
    %c0_22 = arith.constant 0 : index
    %41 = vector.load %arg1[%c1, %c0_22] : memref<2x16xf32, #tpu.memory_space<vmem>>, vector<1x16xf32>
    %42 = vector.broadcast %41 : vector<1x16xf32> to vector<16x16xf32>
    %43 = arith.mulf %12, %42 : vector<16x16xf32>
    %cst_23 = arith.constant dense<0.000000e+00> : vector<16xf32>
    %44 = vector.multi_reduction <add>, %43, %cst_23 [1] : vector<16x16xf32> to vector<16xf32>
    %45 = vector.shape_cast %44 : vector<16xf32> to vector<16x1xf32>
    %46 = arith.addf %45, %14 : vector<16x1xf32>
    %47 = vector.broadcast %41 : vector<1x16xf32> to vector<16x16xf32>
    %48 = arith.mulf %13, %47 : vector<16x16xf32>
    %cst_24 = arith.constant dense<0.000000e+00> : vector<16xf32>
    %49 = vector.multi_reduction <add>, %48, %cst_24 [1] : vector<16x16xf32> to vector<16xf32>
    %50 = vector.shape_cast %49 : vector<16xf32> to vector<16x1xf32>
    %51 = arith.addf %50, %15 : vector<16x1xf32>
    %cst_25 = arith.constant 1.000000e+00 : f32
    %52 = vector.broadcast %cst_25 : f32 to vector<16x1xf32>
    %53 = arith.addf %52, %46 : vector<16x1xf32>
    %54 = arith.mulf %53, %11 : vector<16x1xf32>
    %55 = arith.mulf %54, %4 : vector<16x1xf32>
    %56 = arith.subf %51, %55 : vector<16x1xf32>
    %c1_26 = arith.constant 1 : index
    %c0_27 = arith.constant 0 : index
    %c0_28 = arith.constant 0 : index
    %57 = vector.load %arg6[%c1_26, %c0_27, %c0_28] : memref<2x16x256xf32, #tpu.memory_space<vmem>>, vector<1x16x256xf32>
    %58 = vector.shape_cast %57 : vector<1x16x256xf32> to vector<16x256xf32>
    %59 = vector.broadcast %54 : vector<16x1xf32> to vector<16x256xf32>
    %60 = arith.mulf %58, %59 : vector<16x256xf32>
    %61 = vector.broadcast %56 : vector<16x1xf32> to vector<16x256xf32>
    %62 = arith.addf %60, %61 : vector<16x256xf32>
    %c1_29 = arith.constant 1 : index
    %c0_30 = arith.constant 0 : index
    %c0_31 = arith.constant 0 : index
    %63 = vector.load %arg7[%c1_29, %c0_30, %c0_31] : memref<2x16x256xf32, #tpu.memory_space<vmem>>, vector<1x16x256xf32>
    %64 = vector.shape_cast %63 : vector<1x16x256xf32> to vector<16x256xf32>
    %65 = vector.shape_cast %62 : vector<16x256xf32> to vector<1x16x256xf32>
    tpu.vector_store %arg7[%c1_29, %c0_30, %c0_31], %65 {strides = array<i32>} : memref<2x16x256xf32, #tpu.memory_space<vmem>>, vector<1x16x256xf32>,
    return
  }
  func.func @transform_0(%arg0: i32) -> (i32, i32) {
    %c0_i32 = arith.constant 0 : i32
    %c0_i32_0 = arith.constant 0 : i32
    %c0_i32_1 = arith.constant 0 : i32
    return %c0_i32, %c0_i32_0 : i32, i32
  }
  func.func @transform_1(%arg0: i32) -> (i32, i32) {
    %c0_i32 = arith.constant 0 : i32
    %c0_i32_0 = arith.constant 0 : i32
    return %arg0, %c0_i32 : i32, i32
  }
  func.func @transform_2(%arg0: i32) -> (i32, i32) {
    %c0_i32 = arith.constant 0 : i32
    %c0_i32_0 = arith.constant 0 : i32
    return %arg0, %c0_i32 : i32, i32
  }
  func.func @transform_3(%arg0: i32) -> (i32, i32) {
    %c0_i32 = arith.constant 0 : i32
    %c0_i32_0 = arith.constant 0 : i32
    return %arg0, %c0_i32 : i32, i32
  }
  func.func @transform_4(%arg0: i32) -> (i32, i32) {
    %c0_i32 = arith.constant 0 : i32
    %c0_i32_0 = arith.constant 0 : i32
    return %arg0, %c0_i32 : i32, i32
  }
  func.func @transform_5(%arg0: i32) -> (i32, i32, i32) {
    %c0_i32 = arith.constant 0 : i32
    %c0_i32_0 = arith.constant 0 : i32
    %c0_i32_1 = arith.constant 0 : i32
    return %c0_i32, %arg0, %c0_i32_0 : i32, i32, i32
  }
  func.func @transform_6(%arg0: i32) -> (i32, i32, i32) {
    %c0_i32 = arith.constant 0 : i32
    %c0_i32_0 = arith.constant 0 : i32
    %c0_i32_1 = arith.constant 0 : i32
    return %c0_i32, %arg0, %c0_i32_0 : i32, i32, i32
  }
}

</mosaic_0001>

<llo_original>
// kernel: tpu_custom_call.1
$region0: #{tpu_custom_call.1}
  #allocation0 [shape = 'u32[]', space=smem, size = 0x4, offset = 0x4, fixed_abs, tag = 'smem constant byte address 0x4 - core index']
  #allocation1 [shape = 'u32[144,128]{1,0:T(1,128)}', space=vmem, size = 0x12000, scoped, tag = 'internal scratch']
  #allocation5 [shape = 's32[]', space=sflag, size = 0x4, offset = 0, fixed_abs, tag = 'sflag constant byte address 0x0 - dummy sync flag']
  %s0 = inlined_call_operand.vmem [shape: f32[2,16], index: 0, kind: input, shape index: {}]
  %s1 = inlined_call_operand.vmem [shape: f32[32,16], index: 1, kind: input, shape index: {}]
  %s2 = inlined_call_operand.vmem [shape: f32[32,1], index: 2, kind: input, shape index: {}]
  %s3 = inlined_call_operand.vmem [shape: f32[32,16], index: 3, kind: input, shape index: {}]
  %s4 = inlined_call_operand.vmem [shape: f32[32,1], index: 4, kind: input, shape index: {}]
  %s5 = inlined_call_operand.vmem [shape: f32[2,32,256], index: 5, kind: input, shape index: {}]
  %s6 = inlined_call_operand.hbm [shape: f32[2,32,256], index: 6, kind: output, shape index: {}]
  %s7 = sld [smem:[#allocation0]]
  $region87: #{tpu_custom_call.1} parent=0
    _
  %s9 = ssub.s32 1, %s7
  %s10 = scalar_select 0, %s9, %s7
  $region1: #{tpu_custom_call.1} parent=0
    #allocation2 [shape = 'u8[65536]{0}', space=vmem, size = 0x10000, scoped, tag = 'input window, operand 5']
    #allocation3 [shape = 'u8[65536]{0}', space=vmem, size = 0x10000, scoped, tag = 'output window, operand 0']
    #allocation4 [shape = 's32[2]{0}', space=sflag, size = 0x8, scoped, tag = 'scoped memory for tpu_custom_call.1']
    %11 = vsyncpa [#allocation4], 0
    %s12 = scalar_lea.sflag [#allocation4], 1
    %13 = vsyncpa %s12, 0
    loop: start=0, step=1, limit=4
    $region2: #{tpu_custom_call.1} parent=1 // loop_pre_header
      _
    $region3: #{tpu_custom_call.1} parent=1 // loop_header
      %s15 = sphi 0, %s19
      %p16 = scmp.ge.s32.totalorder %s15, 4
      %s23 = sphi 0, %s23
      %s25 = sphi 0, %s23
      %s26 = sphi 0, %s25
      %s40 = sphi 0, %s26
      %s46 = sphi 0, %s48
      %s49 = sphi 0, %s46
      %s50 = sphi 0, %s49
      %s66 = sphi 0, %s50
      %s72 = sphi 0, %s74
      %s75 = sphi 0, %s72
      %s76 = sphi 0, %s75
      %s92 = sphi 0, %s76
      %s98 = sphi 0, %s100
      %s101 = sphi 0, %s98
      %s102 = sphi 0, %s101
      %s118 = sphi 0, %s102
      %s124 = sphi 0, %s126
      %s127 = sphi 0, %s124
      %s128 = sphi 0, %s127
      %s144 = sphi 0, %s128
      %s150 = sphi 0, %s152
      %s153 = sphi 0, %s150
      %s154 = sphi 0, %s153
      %s170 = sphi 0, %s154
      %s176 = sphi 0, %s178
      %s179 = sphi 0, %s176
      %s180 = sphi 0, %s179
      %s196 = sphi 0, %s180
    $region4: #{tpu_custom_call.1} parent=1 // loop_header_branch
      %18 = sbr.rel (%p16) target = $region8
    $region5: #{tpu_custom_call.1} parent=1 // loop_body
      %s20 = ssub.s32 %s15, 1
      %s21 = ssub.s32 %s15, 2
      %s22 = sadd.s32 %s15, 1
      %s24 = sadd.s32 %s23, 1
      %p27 = scmp.eq.s32.totalorder %s15, 1
      %p28 = scmp.ne.s32.totalorder %s23, %s25
      %p29 = scmp.eq.s32.totalorder %s15, 0
      %p30 = por %p28, %p29
      %p31 = scmp.ne.s32.totalorder %s23, %s25
      %p32 = scmp.eq.s32.totalorder %s20, 1
      %p33 = por %p31, %p32
      %p34 = scmp.ne.s32.totalorder %s25, %s26
      %p35 = scmp.eq.s32.totalorder %s20, 0
      %p36 = por %p34, %p35
      %p37 = scmp.ne.s32.totalorder %s25, %s26
      %p38 = scmp.eq.s32.totalorder %s21, 1
      %p39 = por %p37, %p38
      %p41 = scmp.ne.s32.totalorder %s26, %s40
      %p42 = scmp.eq.s32.totalorder %s21, 0
      %p43 = por %p41, %p42
      %s44 = ssub.s32 %s15, %s22
      %p45 = scmp.eq.s32.totalorder %s44, 0
      %s47 = sadd.s32 %s46, 1
      %s48 = scalar_select %p45, %s46, %s47
      %p51 = pneg %p45
      %p52 = scmp.eq.s32.totalorder %s15, 1
      %p53 = por %p51, %p52
      %p54 = scmp.ne.s32.totalorder %s46, %s49
      %p55 = scmp.eq.s32.totalorder %s15, 0
      %p56 = por %p54, %p55
      %p57 = scmp.ne.s32.totalorder %s46, %s49
      %p58 = scmp.eq.s32.totalorder %s20, 1
      %p59 = por %p57, %p58
      %p60 = scmp.ne.s32.totalorder %s49, %s50
      %p61 = scmp.eq.s32.totalorder %s20, 0
      %p62 = por %p60, %p61
      %p63 = scmp.ne.s32.totalorder %s49, %s50
      %p64 = scmp.eq.s32.totalorder %s21, 1
      %p65 = por %p63, %p64
      %p67 = scmp.ne.s32.totalorder %s50, %s66
      %p68 = scmp.eq.s32.totalorder %s21, 0
      %p69 = por %p67, %p68
      %s70 = ssub.s32 %s15, %s22
      %p71 = scmp.eq.s32.totalorder %s70, 0
      %s73 = sadd.s32 %s72, 1
      %s74 = scalar_select %p71, %s72, %s73
      %p77 = pneg %p71
      %p78 = scmp.eq.s32.totalorder %s15, 1
      %p79 = por %p77, %p78
      %p80 = scmp.ne.s32.totalorder %s72, %s75
      %p81 = scmp.eq.s32.totalorder %s15, 0
      %p82 = por %p80, %p81
      %p83 = scmp.ne.s32.totalorder %s72, %s75
      %p84 = scmp.eq.s32.totalorder %s20, 1
      %p85 = por %p83, %p84
      %p86 = scmp.ne.s32.totalorder %s75, %s76
      %p87 = scmp.eq.s32.totalorder %s20, 0
      %p88 = por %p86, %p87
      %p89 = scmp.ne.s32.totalorder %s75, %s76
      %p90 = scmp.eq.s32.totalorder %s21, 1
      %p91 = por %p89, %p90
      %p93 = scmp.ne.s32.totalorder %s76, %s92
      %p94 = scmp.eq.s32.totalorder %s21, 0
      %p95 = por %p93, %p94
      %s96 = ssub.s32 %s15, %s22
      %p97 = scmp.eq.s32.totalorder %s96, 0
      %s99 = sadd.s32 %s98, 1
      %s100 = scalar_select %p97, %s98, %s99
      %p103 = pneg %p97
      %p104 = scmp.eq.s32.totalorder %s15, 1
      %p105 = por %p103, %p104
      %p106 = scmp.ne.s32.totalorder %s98, %s101
      %p107 = scmp.eq.s32.totalorder %s15, 0
      %p108 = por %p106, %p107
      %p109 = scmp.ne.s32.totalorder %s98, %s101
      %p110 = scmp.eq.s32.totalorder %s20, 1
      %p111 = por %p109, %p110
      %p112 = scmp.ne.s32.totalorder %s101, %s102
      %p113 = scmp.eq.s32.totalorder %s20, 0
      %p114 = por %p112, %p113
      %p115 = scmp.ne.s32.totalorder %s101, %s102
      %p116 = scmp.eq.s32.totalorder %s21, 1
      %p117 = por %p115, %p116
      %p119 = scmp.ne.s32.totalorder %s102, %s118
      %p120 = scmp.eq.s32.totalorder %s21, 0
      %p121 = por %p119, %p120
      %s122 = ssub.s32 %s15, %s22
      %p123 = scmp.eq.s32.totalorder %s122, 0
      %s125 = sadd.s32 %s124, 1
      %s126 = scalar_select %p123, %s124, %s125
      %p129 = pneg %p123
      %p130 = scmp.eq.s32.totalorder %s15, 1
      %p131 = por %p129, %p130
      %p132 = scmp.ne.s32.totalorder %s124, %s127
      %p133 = scmp.eq.s32.totalorder %s15, 0
      %p134 = por %p132, %p133
      %p135 = scmp.ne.s32.totalorder %s124, %s127
      %p136 = scmp.eq.s32.totalorder %s20, 1
      %p137 = por %p135, %p136
      %p138 = scmp.ne.s32.totalorder %s127, %s128
      %p139 = scmp.eq.s32.totalorder %s20, 0
      %p140 = por %p138, %p139
      %p141 = scmp.ne.s32.totalorder %s127, %s128
      %p142 = scmp.eq.s32.totalorder %s21, 1
      %p143 = por %p141, %p142
      %p145 = scmp.ne.s32.totalorder %s128, %s144
      %p146 = scmp.eq.s32.totalorder %s21, 0
      %p147 = por %p145, %p146
      %s148 = ssub.s32 %s15, %s22
      %p149 = scmp.eq.s32.totalorder %s148, 0
      %s151 = sadd.s32 %s150, 1
      %s152 = scalar_select %p149, %s150, %s151
      %p155 = pneg %p149
      %p156 = scmp.eq.s32.totalorder %s15, 1
      %p157 = por %p155, %p156
      %p158 = scmp.ne.s32.totalorder %s150, %s153
      %p159 = scmp.eq.s32.totalorder %s15, 0
      %p160 = por %p158, %p159
      %p161 = scmp.ne.s32.totalorder %s150, %s153
      %p162 = scmp.eq.s32.totalorder %s20, 1
      %p163 = por %p161, %p162
      %p164 = scmp.ne.s32.totalorder %s153, %s154
      %p165 = scmp.eq.s32.totalorder %s20, 0
      %p166 = por %p164, %p165
      %p167 = scmp.ne.s32.totalorder %s153, %s154
      %p168 = scmp.eq.s32.totalorder %s21, 1
      %p169 = por %p167, %p168
      %p171 = scmp.ne.s32.totalorder %s154, %s170
      %p172 = scmp.eq.s32.totalorder %s21, 0
      %p173 = por %p171, %p172
      %s174 = ssub.s32 %s15, %s22
      %p175 = scmp.eq.s32.totalorder %s174, 0
      %s177 = sadd.s32 %s176, 1
      %s178 = scalar_select %p175, %s176, %s177
      %p181 = pneg %p175
      %p182 = scmp.eq.s32.totalorder %s15, 1
      %p183 = por %p181, %p182
      %p184 = scmp.ne.s32.totalorder %s176, %s179
      %p185 = scmp.eq.s32.totalorder %s15, 0
      %p186 = por %p184, %p185
      %p187 = scmp.ne.s32.totalorder %s176, %s179
      %p188 = scmp.eq.s32.totalorder %s20, 1
      %p189 = por %p187, %p188
      %p190 = scmp.ne.s32.totalorder %s179, %s180
      %p191 = scmp.eq.s32.totalorder %s20, 0
      %p192 = por %p190, %p191
      %p193 = scmp.ne.s32.totalorder %s179, %s180
      %p194 = scmp.eq.s32.totalorder %s21, 1
      %p195 = por %p193, %p194
      %p197 = scmp.ne.s32.totalorder %s180, %s196
      %p198 = scmp.eq.s32.totalorder %s21, 0
      %p199 = por %p197, %p198
      %p200 = scmp.le.s32.totalorder 1, %s15
      %p201 = scmp.lt.s32.totalorder %s15, 3
      %p202 = pnand %p200, %p201
      %p203 = pneg %p202
      // Predicated region
      $region9: #{tpu_custom_call.1} parent=5 // pred_check
        _
      $region10: #{tpu_custom_call.1} parent=5 // pred_check_branch
        %205 = sbr.rel (%p202) target = $region12
      $region11: #{tpu_custom_call.1} parent=5 // pred_region
        %s206 = ssub.s32 %s15, 1
        // Predicated region
        $region13: #{tpu_custom_call.1} parent=11 // pred_check
          %p207 = pneg %p36
        $region14: #{tpu_custom_call.1} parent=11 // pred_check_branch
          %209 = sbr.rel (%p207) target = $region16
        $region15: #{tpu_custom_call.1} parent=11 // pred_region
          _
        $region16: #{tpu_custom_call.1} parent=11 // pred_fallthru
          _
      $region12: #{tpu_custom_call.1} parent=5 // pred_fallthru
        _
      %p210 = scmp.lt.s32.totalorder %s15, 2
      // Predicated region
      $region17: #{tpu_custom_call.1} parent=5 // pred_check
        %p211 = pneg %p210
      $region18: #{tpu_custom_call.1} parent=5 // pred_check_branch
        %213 = sbr.rel (%p211) target = $region20
      $region19: #{tpu_custom_call.1} parent=5 // pred_region
        // Predicated region
        $region21: #{tpu_custom_call.1} parent=19 // pred_check
          %p214 = pneg %p56
        $region22: #{tpu_custom_call.1} parent=19 // pred_check_branch
          %216 = sbr.rel (%p214) target = $region24
        $region23: #{tpu_custom_call.1} parent=19 // pred_region
          %s217 = smul.u32 2, %s15
          %p218 = scmp.lt.s32.totalorder %s217, 3
          %s219 = scalar_select %p218, %s217, 3
          %s220 = smul.addr %s219, 8
          %s221 = scalar_lea.vmem %s1, %s220
          %s222 = smul.u32 2, %s15
        $region24: #{tpu_custom_call.1} parent=19 // pred_fallthru
          _
        // Predicated region
        $region25: #{tpu_custom_call.1} parent=19 // pred_check
          %p223 = pneg %p82
        $region26: #{tpu_custom_call.1} parent=19 // pred_check_branch
          %225 = sbr.rel (%p223) target = $region28
        $region27: #{tpu_custom_call.1} parent=19 // pred_region
          %s226 = smul.u32 2, %s15
          %p227 = scmp.lt.s32.totalorder %s226, 3
          %s228 = scalar_select %p227, %s226, 3
          %s229 = smul.addr %s228, 8
          %s230 = scalar_lea.vmem %s2, %s229
          %s231 = smul.u32 2, %s15
        $region28: #{tpu_custom_call.1} parent=19 // pred_fallthru
          _
        // Predicated region
        $region29: #{tpu_custom_call.1} parent=19 // pred_check
          %p232 = pneg %p108
        $region30: #{tpu_custom_call.1} parent=19 // pred_check_branch
          %234 = sbr.rel (%p232) target = $region32
        $region31: #{tpu_custom_call.1} parent=19 // pred_region
          %s235 = smul.u32 2, %s15
          %p236 = scmp.lt.s32.totalorder %s235, 3
          %s237 = scalar_select %p236, %s235, 3
          %s238 = smul.addr %s237, 8
          %s239 = scalar_lea.vmem %s3, %s238
          %s240 = smul.u32 2, %s15
        $region32: #{tpu_custom_call.1} parent=19 // pred_fallthru
          _
        // Predicated region
        $region33: #{tpu_custom_call.1} parent=19 // pred_check
          %p241 = pneg %p134
        $region34: #{tpu_custom_call.1} parent=19 // pred_check_branch
          %243 = sbr.rel (%p241) target = $region36
        $region35: #{tpu_custom_call.1} parent=19 // pred_region
          %s244 = smul.u32 2, %s15
          %p245 = scmp.lt.s32.totalorder %s244, 3
          %s246 = scalar_select %p245, %s244, 3
          %s247 = smul.addr %s246, 8
          %s248 = scalar_lea.vmem %s4, %s247
          %s249 = smul.u32 2, %s15
        $region36: #{tpu_custom_call.1} parent=19 // pred_fallthru
          _
        // Predicated region
        $region37: #{tpu_custom_call.1} parent=19 // pred_check
          %p250 = pneg %p160
        $region38: #{tpu_custom_call.1} parent=19 // pred_check_branch
          %252 = sbr.rel (%p250) target = $region40
        $region39: #{tpu_custom_call.1} parent=19 // pred_region
          %s253 = sand.u32 %s150, 1
          %s254 = sand.u32 %s150, 1
          %s255 = smul.addr %s254, 64
          %s256 = scalar_lea.vmem [#allocation2], %s255
          %s257 = smul.u32 2, %s15
          %s258 = smul.addr %s257, 2
          %s259 = smul.addr %s258, 8
          %s260 = scalar_lea.vmem %s5, %s259
          // Predicated region
          $region41: #{tpu_custom_call.1} parent=39 // pred_check
            _
          $region42: #{tpu_custom_call.1} parent=39 // pred_check_branch
            %262 = sbr.rel (0) target = $region44
          $region43: #{tpu_custom_call.1} parent=39 // pred_region
            // Predicated region
            $region45: #{tpu_custom_call.1} parent=43 // pred_check
              _
            $region46: #{tpu_custom_call.1} parent=43 // pred_check_branch
              %264 = sbr.rel (0) target = $region48
            $region47: #{tpu_custom_call.1} parent=43 // pred_region
              loop: start=0, step=1, limit=1
              $region49: #{tpu_custom_call.1} parent=47 // loop_pre_header
                _
              $region50: #{tpu_custom_call.1} parent=47 // loop_header
                %s266 = sphi 0, %s270
                %p267 = scmp.ge.s32.totalorder %s266, 1
                %s271 = sphi %s260, %s260
                %s272 = sphi %s256, %s256
              $region51: #{tpu_custom_call.1} parent=47 // loop_header_branch
                %269 = sbr.rel (%p267) target = $region55
              $region52: #{tpu_custom_call.1} parent=47 // loop_body
                %v273 = vld [vmem:[%s271] sm:$0xff]
                %274 = vst [vmem:[%s272] sm:$0xff] %v273
                %v275 = vld [vmem:[%s271 + $0x8] sm:$0xff]
                %276 = vst [vmem:[%s272 + $0x8] sm:$0xff] %v275
                %v277 = vld [vmem:[%s271 + $0x10] sm:$0xff]
                %278 = vst [vmem:[%s272 + $0x10] sm:$0xff] %v277
                %v279 = vld [vmem:[%s271 + $0x18] sm:$0xff]
                %280 = vst [vmem:[%s272 + $0x18] sm:$0xff] %v279
                %v281 = vld [vmem:[%s271 + $0x40] sm:$0xff]
                %282 = vst [vmem:[%s272 + $0x20] sm:$0xff] %v281
                %v283 = vld [vmem:[%s271 + $0x48] sm:$0xff]
                %284 = vst [vmem:[%s272 + $0x28] sm:$0xff] %v283
                %v285 = vld [vmem:[%s271 + $0x50] sm:$0xff]
                %286 = vst [vmem:[%s272 + $0x30] sm:$0xff] %v285
                %v287 = vld [vmem:[%s271 + $0x58] sm:$0xff]
                %288 = vst [vmem:[%s272 + $0x38] sm:$0xff] %v287
              $region53: #{tpu_custom_call.1} parent=47 // loop_footer
                %s270 = sadd.s32 1, %s266
              $region54: #{tpu_custom_call.1} parent=47 // loop_footer_branch
                %265 = sbr.rel target = $region50
              $region55: #{tpu_custom_call.1} parent=47 // loop_exit
                _
            $region48: #{tpu_custom_call.1} parent=43 // pred_fallthru
              _
            // Predicated region
            $region56: #{tpu_custom_call.1} parent=43 // pred_check
              _
            $region57: #{tpu_custom_call.1} parent=43 // pred_check_branch
              %290 = sbr.rel target = $region59
            $region58: #{tpu_custom_call.1} parent=43 // pred_region
              _
            $region59: #{tpu_custom_call.1} parent=43 // pred_fallthru
              _
          $region44: #{tpu_custom_call.1} parent=39 // pred_fallthru
            _
          %291 = vnop
        $region40: #{tpu_custom_call.1} parent=19 // pred_fallthru
          _
      $region20: #{tpu_custom_call.1} parent=5 // pred_fallthru
        _
      %p292 = scmp.le.s32.totalorder 1, %s15
      %p293 = scmp.lt.s32.totalorder %s15, 3
      %p294 = pnand %p292, %p293
      %p295 = pneg %p294
      // Predicated region
      $region60: #{tpu_custom_call.1} parent=5 // pred_check
        _
      $region61: #{tpu_custom_call.1} parent=5 // pred_check_branch
        %297 = sbr.rel (%p294) target = $region63
      $region62: #{tpu_custom_call.1} parent=5 // pred_region
        %s298 = ssub.s32 %s15, 1
        %s299 = sand.u32 %s153, 1
        %s300 = sand.u32 %s153, 1
        %s301 = smul.addr %s300, 64
        %s302 = scalar_lea.vmem [#allocation2], %s301
        // Predicated region
        $region64: #{tpu_custom_call.1} parent=62 // pred_check
          %p303 = pneg %p166
        $region65: #{tpu_custom_call.1} parent=62 // pred_check_branch
          %305 = sbr.rel (%p303) target = $region67
        $region66: #{tpu_custom_call.1} parent=62 // pred_region
          _
        $region67: #{tpu_custom_call.1} parent=62 // pred_fallthru
          _
        %p306 = pneg %p36
        %p307 = pneg %p33
        %s308 = smul.u32 2, %s20
        %p309 = scmp.lt.s32.totalorder %s308, 3
        %s310 = scalar_select %p309, %s308, 3
        %s311 = smul.addr %s310, 8
        %s312 = scalar_lea.vmem %s1, %s311
        %p313 = pneg %p62
        %p314 = pneg %p59
        %s315 = smul.u32 2, %s20
        %p316 = scmp.lt.s32.totalorder %s315, 3
        %s317 = scalar_select %p316, %s315, 3
        %s318 = smul.addr %s317, 8
        %s319 = scalar_lea.vmem %s2, %s318
        %p320 = pneg %p88
        %p321 = pneg %p85
        %s322 = smul.u32 2, %s20
        %p323 = scmp.lt.s32.totalorder %s322, 3
        %s324 = scalar_select %p323, %s322, 3
        %s325 = smul.addr %s324, 8
        %s326 = scalar_lea.vmem %s3, %s325
        %p327 = pneg %p114
        %p328 = pneg %p111
        %s329 = smul.u32 2, %s20
        %p330 = scmp.lt.s32.totalorder %s329, 3
        %s331 = scalar_select %p330, %s329, 3
        %s332 = smul.addr %s331, 8
        %s333 = scalar_lea.vmem %s4, %s332
        %p334 = pneg %p140
        %p335 = pneg %p137
        %s336 = sand.u32 %s153, 1
        %s337 = sand.u32 %s153, 1
        %s338 = smul.addr %s337, 64
        %s339 = scalar_lea.vmem [#allocation2], %s338
        %p340 = pneg %p166
        %p341 = pneg %p163
        %p342 = pneg %p192
        %p343 = pneg %p189
        %s344 = sand.u32 %s179, 1
        %s345 = scalar_lea.sflag [#allocation4], %s344
        %s346 = sand.u32 %s179, 1
        %s347 = smul.addr %s346, 64
        %s348 = scalar_lea.vmem [#allocation3], %s347
        %s349 = smul.u32 2, %s20
        %p350 = scmp.lt.s32.totalorder %s349, 3
        %s351 = scalar_select %p350, %s349, 3
        %s352 = smul.addr %s351, 8
        %s353 = scalar_lea.vmem %s1, %s352
        %s354 = smul.u32 2, %s20
        %s355 = smul.u32 2, %s20
        %p356 = scmp.lt.s32.totalorder %s355, 3
        %s357 = scalar_select %p356, %s355, 3
        %s358 = smul.addr %s357, 8
        %s359 = scalar_lea.vmem %s2, %s358
        %s360 = smul.u32 2, %s20
        %s361 = smul.u32 2, %s20
        %p362 = scmp.lt.s32.totalorder %s361, 3
        %s363 = scalar_select %p362, %s361, 3
        %s364 = smul.addr %s363, 8
        %s365 = scalar_lea.vmem %s3, %s364
        %s366 = smul.u32 2, %s20
        %s367 = smul.u32 2, %s20
        %p368 = scmp.lt.s32.totalorder %s367, 3
        %s369 = scalar_select %p368, %s367, 3
        %s370 = smul.addr %s369, 8
        %s371 = scalar_lea.vmem %s4, %s370
        %s372 = smul.u32 2, %s20
        %s373 = smul.u32 2, %s20
        %s374 = smul.u32 2, %s20
        loop: start=0, step=1, limit=2
        $region68: #{tpu_custom_call.1} parent=62 // loop_pre_header
          _
        $region69: #{tpu_custom_call.1} parent=62 // loop_header
          %s376 = sphi 0, %s380
          %p377 = scmp.ge.s32.totalorder %s376, 2
          %v381 = vphi 0.0, %v398
          %v382 = vphi 0.0, %v399
          %v383 = vphi 0.0, %v410
          %v384 = vphi 0.0, %v411
        $region70: #{tpu_custom_call.1} parent=62 // loop_header_branch
          %379 = sbr.rel (%p377) target = $region74
        $region71: #{tpu_custom_call.1} parent=62 // loop_body
          %s385 = smul.u32 %s376, 4
          %s386 = smul.addr %s385, 8
          %s387 = scalar_lea.vmem %s302, %s386 [#allocation2]
          %v388 = vld [vmem:[%s387] sm:$0xff]
          %v389 = vld [vmem:[%s387 + $0x8] sm:$0xff]
          %v390 = vld [vmem:[%s387 + $0x10] sm:$0xff]
          %v391 = vld [vmem:[%s387 + $0x18] sm:$0xff]
          %v392 = vadd.f32 %v388, %v389
          %393 = vadd.xlane.f32.xlu0 %v392
          %v394 = vpop.xlane.xlu0 %393
          %v395 = vadd.f32 %v390, %v391
          %396 = vadd.xlane.f32.xlu0 %v395
          %v397 = vpop.xlane.xlu0 %396
          %v398 = vadd.f32 %v381, %v394
          %v399 = vadd.f32 %v382, %v397
          %v400 = vmul.f32 %v388, %v388
          %v401 = vmul.f32 %v389, %v389
          %v402 = vmul.f32 %v390, %v390
          %v403 = vmul.f32 %v391, %v391
          %v404 = vadd.f32 %v400, %v401
          %405 = vadd.xlane.f32.xlu0 %v404
          %v406 = vpop.xlane.xlu0 %405
          %v407 = vadd.f32 %v402, %v403
          %408 = vadd.xlane.f32.xlu0 %v407
          %v409 = vpop.xlane.xlu0 %408
          %v410 = vadd.f32 %v383, %v406
          %v411 = vadd.f32 %v384, %v409
        $region72: #{tpu_custom_call.1} parent=62 // loop_footer
          %s380 = sadd.s32 1, %s376
        $region73: #{tpu_custom_call.1} parent=62 // loop_footer_branch
          %375 = sbr.rel target = $region69
        $region74: #{tpu_custom_call.1} parent=62 // loop_exit
          _
        %v412 = vmul.f32 %v381, 0.001953125
        %v413 = vmul.f32 %v382, 0.001953125
        %v414 = vmul.f32 %v383, 0.001953125
        %v415 = vmul.f32 %v384, 0.001953125
        %v416 = vmul.f32 %v412, %v412
        %v417 = vmul.f32 %v413, %v413
        %v418 = vsub.f32 %v414, %v416
        %v419 = vsub.f32 %v415, %v417
        %v420 = vadd.f32 %v418, 0.0001
        %v421 = vadd.f32 %v419, 0.0001
        %v422 = vrsqrt.pop %v420
        %v423 = vrsqrt.pop %v421
        %v424 = vld [vmem:[%s353] sm:$0xff]
        %v425 = vld [vmem:[%s353 + $0x8] sm:$0xff]
        %v426 = vld [vmem:[%s365] sm:$0xff]
        %v427 = vld [vmem:[%s365 + $0x8] sm:$0xff]
        %v428 = vld [vmem:[%s359] sm:$0xff]
        %v429 = vld [vmem:[%s359 + $0x8] sm:$0xff]
        %v430 = vld [vmem:[%s371] sm:$0xff]
        %v431 = vld [vmem:[%s371 + $0x8] sm:$0xff]
        %v432 = vld [vmem:[%s0] sm:$0x1]
        %v433 = vlaneseq
        %v434 = vshrl.u32 %v433, 7
        %v435 = vsub.s32 0, %v434
        %v436 = vrot.slane %v432, %v435
        %v437 = vmul.f32 %v424, %v436
        %v438 = vmul.f32 %v425, %v436
        %vm439 = vcmask 130048
        %v440 = vsel %vm439, %v437, 0.0
        %441 = vadd.xlane.f32.xlu0 %v440
        %v442 = vpop.xlane.xlu0 %441
        %v443 = vsel %vm439, %v438, 0.0
        %444 = vadd.xlane.f32.xlu0 %v443
        %v445 = vpop.xlane.xlu0 %444
        %v446 = vadd.f32 %v442, %v428
        %v447 = vadd.f32 %v445, %v429
        %v448 = vmul.f32 %v426, %v436
        %v449 = vmul.f32 %v427, %v436
        %v450 = vsel %vm439, %v448, 0.0
        %451 = vadd.xlane.f32.xlu0 %v450
        %v452 = vpop.xlane.xlu0 %451
        %v453 = vsel %vm439, %v449, 0.0
        %454 = vadd.xlane.f32.xlu0 %v453
        %v455 = vpop.xlane.xlu0 %454
        %v456 = vadd.f32 %v452, %v430
        %v457 = vadd.f32 %v455, %v431
        %v458 = vadd.f32 %v446, 1.0
        %v459 = vadd.f32 %v447, 1.0
        %v460 = vmul.f32 %v458, %v422
        %v461 = vmul.f32 %v459, %v423
        %v462 = vmul.f32 %v460, %v412
        %v463 = vmul.f32 %v461, %v413
        %v464 = vsub.f32 %v456, %v462
        %v465 = vsub.f32 %v457, %v463
        %v466 = vld [vmem:[%s302] sm:$0xff]
        %v467 = vld [vmem:[%s302 + $0x8] sm:$0xff]
        %v468 = vld [vmem:[%s302 + $0x10] sm:$0xff]
        %v469 = vld [vmem:[%s302 + $0x18] sm:$0xff]
        %471 = vset.pattern.permute.xlu0 0
        %472 = vperm.xlu0 %471, %v460
        %v473 = vpop.permute.xlu0 %472
        %476 = vset.pattern.permute.xlu0 0
        %477 = vperm.xlu0 %476, %v461
        %v478 = vpop.permute.xlu0 %477
        %v480 = vmul.f32 %v466, %v473
        %v481 = vmul.f32 %v467, %v473
        %v482 = vmul.f32 %v468, %v478
        %v483 = vmul.f32 %v469, %v478
        %485 = vset.pattern.permute.xlu0 0
        %486 = vperm.xlu0 %485, %v464
        %v487 = vpop.permute.xlu0 %486
        %490 = vset.pattern.permute.xlu0 0
        %491 = vperm.xlu0 %490, %v465
        %v492 = vpop.permute.xlu0 %491
        %v494 = vadd.f32 %v480, %v487
        %v495 = vadd.f32 %v481, %v487
        %v496 = vadd.f32 %v482, %v492
        %v497 = vadd.f32 %v483, %v492
        %498 = vst [vmem:[%s348] sm:$0xff] %v494
        %499 = vst [vmem:[%s348 + $0x8] sm:$0xff] %v495
        %500 = vst [vmem:[%s348 + $0x10] sm:$0xff] %v496
        %501 = vst [vmem:[%s348 + $0x18] sm:$0xff] %v497
        %v502 = vld [vmem:[%s0 + $0x1] sm:$0x1]
        %v503 = vlaneseq
        %v504 = vshrl.u32 %v503, 7
        %v505 = vsub.s32 0, %v504
        %v506 = vrot.slane %v502, %v505
        %v507 = vmul.f32 %v424, %v506
        %v508 = vmul.f32 %v425, %v506
        %v509 = vsel %vm439, %v507, 0.0
        %510 = vadd.xlane.f32.xlu0 %v509
        %v511 = vpop.xlane.xlu0 %510
        %v512 = vsel %vm439, %v508, 0.0
        %513 = vadd.xlane.f32.xlu0 %v512
        %v514 = vpop.xlane.xlu0 %513
        %v515 = vadd.f32 %v511, %v428
        %v516 = vadd.f32 %v514, %v429
        %v517 = vmul.f32 %v426, %v506
        %v518 = vmul.f32 %v427, %v506
        %v519 = vsel %vm439, %v517, 0.0
        %520 = vadd.xlane.f32.xlu0 %v519
        %v521 = vpop.xlane.xlu0 %520
        %v522 = vsel %vm439, %v518, 0.0
        %523 = vadd.xlane.f32.xlu0 %v522
        %v524 = vpop.xlane.xlu0 %523
        %v525 = vadd.f32 %v521, %v430
        %v526 = vadd.f32 %v524, %v431
        %v527 = vadd.f32 %v515, 1.0
        %v528 = vadd.f32 %v516, 1.0
        %v529 = vmul.f32 %v527, %v422
        %v530 = vmul.f32 %v528, %v423
        %v531 = vmul.f32 %v529, %v412
        %v532 = vmul.f32 %v530, %v413
        %v533 = vsub.f32 %v525, %v531
        %v534 = vsub.f32 %v526, %v532
        %s535 = scalar_lea.vmem %s302, 32 [#allocation2]
        %v536 = vld [vmem:[%s535] sm:$0xff]
        %v537 = vld [vmem:[%s535 + $0x8] sm:$0xff]
        %v538 = vld [vmem:[%s535 + $0x10] sm:$0xff]
        %v539 = vld [vmem:[%s535 + $0x18] sm:$0xff]
        %541 = vset.pattern.permute.xlu0 0
        %542 = vperm.xlu0 %541, %v529
        %v543 = vpop.permute.xlu0 %542
        %546 = vset.pattern.permute.xlu0 0
        %547 = vperm.xlu0 %546, %v530
        %v548 = vpop.permute.xlu0 %547
        %v550 = vmul.f32 %v536, %v543
        %v551 = vmul.f32 %v537, %v543
        %v552 = vmul.f32 %v538, %v548
        %v553 = vmul.f32 %v539, %v548
        %555 = vset.pattern.permute.xlu0 0
        %556 = vperm.xlu0 %555, %v533
        %v557 = vpop.permute.xlu0 %556
        %560 = vset.pattern.permute.xlu0 0
        %561 = vperm.xlu0 %560, %v534
        %v562 = vpop.permute.xlu0 %561
        %v564 = vadd.f32 %v550, %v557
        %v565 = vadd.f32 %v551, %v557
        %v566 = vadd.f32 %v552, %v562
        %v567 = vadd.f32 %v553, %v562
        %s568 = scalar_lea.vmem %s348, 32 [#allocation3]
        %569 = vst [vmem:[%s568] sm:$0xff] %v564
        %570 = vst [vmem:[%s568 + $0x8] sm:$0xff] %v565
        %571 = vst [vmem:[%s568 + $0x10] sm:$0xff] %v566
        %572 = vst [vmem:[%s568 + $0x18] sm:$0xff] %v567
        %s573 = sand.u32 %s179, 1
        %s574 = scalar_lea.sflag [#allocation4], %s573
        %s575 = sand.u32 %s179, 1
        %s576 = smul.addr %s575, 64
        %s577 = scalar_lea.vmem [#allocation3], %s576
        // Predicated region
        $region75: #{tpu_custom_call.1} parent=62 // pred_check
          %p578 = pneg %p189
        $region76: #{tpu_custom_call.1} parent=62 // pred_check_branch
          %580 = sbr.rel (%p578) target = $region78
        $region77: #{tpu_custom_call.1} parent=62 // pred_region
          #allocation6 [shape = 'u32[6]{0}', space=smem, size = 0x18, scoped, tag = 'DMA stride descriptor']
          %s581 = smul.u32 2, %s20
          %s583 = ssub.s32 1024, 1024
          %584 = vsyncadd %s574, %s583
          %s585 = smul.addr %s581, 2
          %s586 = smul.addr %s585, 128
          %s587 = scalar_lea.hbm %s6, %s586
          %s589 = sshll.u32 1, 14
          %s590 = sxor.u32 4294967295, %s589
          %s593 = sshll.u32 7, 18
          %s594 = sxor.u32 4294967295, %s593
          %s595 = sand.u32 0, %s594
          %s597 = sor.u32 %s595, 0
          %s598 = sshll.u32 %s577, 4
          %s599 = int_to_ptr.vmem [resolvable:$true] %s598
          %605 = sst [smem:[#allocation6]] 512
          %s606 = scalar_lea.smem [#allocation6], 1
          %607 = sst [smem:[%s606]] 1024
          %s608 = scalar_lea.smem [#allocation6], 2
          %609 = sst [smem:[%s608]] 2
          %s610 = scalar_lea.smem [#allocation6], 3
          %611 = sst [smem:[%s610]] 256
          %s612 = scalar_lea.smem [#allocation6], 4
          %613 = sst [smem:[%s612]] 256
          %s614 = scalar_lea.smem [#allocation6], 5
          %615 = sst [smem:[%s614]] 16
          %617 = dma.general %s599, 1024, %s587, %s574, 131072, [#allocation6], %s597, 0
        $region78: #{tpu_custom_call.1} parent=62 // pred_fallthru
          _
      $region63: #{tpu_custom_call.1} parent=5 // pred_fallthru
        _
      %p618 = scmp.le.s32.totalorder 2, %s15
      // Predicated region
      $region79: #{tpu_custom_call.1} parent=5 // pred_check
        %p619 = pneg %p618
      $region80: #{tpu_custom_call.1} parent=5 // pred_check_branch
        %621 = sbr.rel (%p619) target = $region82
      $region81: #{tpu_custom_call.1} parent=5 // pred_region
        %s622 = ssub.s32 %s15, 2
        // Predicated region
        $region83: #{tpu_custom_call.1} parent=81 // pred_check
          %p623 = pneg %p195
        $region84: #{tpu_custom_call.1} parent=81 // pred_check_branch
          %625 = sbr.rel (%p623) target = $region86
        $region85: #{tpu_custom_call.1} parent=81 // pred_region
          %s626 = sand.u32 %s180, 1
          %s627 = scalar_lea.sflag [#allocation4], %s626
          %s628 = sand.u32 %s180, 1
          %s629 = smul.addr %s628, 64
          %s630 = scalar_lea.vmem [#allocation3], %s629
          %631 = dma.done %s627, 1024
        $region86: #{tpu_custom_call.1} parent=81 // pred_fallthru
          _
      $region82: #{tpu_custom_call.1} parent=5 // pred_fallthru
        _
    $region6: #{tpu_custom_call.1} parent=1 // loop_footer
      %s19 = sadd.s32 1, %s15
    $region7: #{tpu_custom_call.1} parent=1 // loop_footer_branch
      %14 = sbr.rel target = $region3
    $region8: #{tpu_custom_call.1} parent=1 // loop_exit
      _
    %632 = vsyncpa [#allocation4], 1
    %s633 = scalar_lea.sflag [#allocation4], 1
    %634 = vsyncpa %s633, 1

</llo_original>
